<compile_context>
chip_gen: v6e
topology: v6e:2x2x1
jax: 0.10.0
libtpu: 0.0.40
codegen_flags: <defaults>
</compile_context>

<pallas_src>
import jax
import jax.numpy as jnp
from jax.experimental import pallas as pl
from jax.experimental.pallas import tpu as pltpu


IN_FEATURES = 4
OUT_FEATURES = 4
PACK = 128 // IN_FEATURES          # 32 logical rows per 128-lane packed row
DEFAULT_TILE = 8192                # packed rows per grid step -> 4 MiB f32 block


def _packed_linear_kernel(x_ref, w_ref, b_ref, o_ref):
    # x_ref: (TB, 128)   packed input (32 logical rows per packed row)
    # w_ref: (128, 128)  block-diagonal weight: 32 copies of the 4x4 W^T
    # b_ref: (1, 128)    bias tiled 32x
    # o_ref: (TB, 128)   packed output -> fully lane-dense stores
    y = jnp.dot(x_ref[...], w_ref[...], preferred_element_type=jnp.float32)
    o_ref[...] = (y + b_ref[...]).astype(o_ref.dtype)


def _small_linear_kernel(x_ref, wt_ref, b_ref, o_ref):
    # Remainder path (< 32 rows): 4 broadcast VPU FMAs, no MXU, single block.
    x = x_ref[...]          # (R, 4)
    wt = wt_ref[...]        # (4, 4)  pre-transposed W^T
    y = b_ref[...]          # (1, 4)  broadcasts over rows
    for k in range(IN_FEATURES):
        y = y + x[:, k:k + 1] * wt[k:k + 1, :]
    o_ref[...] = y.astype(o_ref.dtype)


def _packed_linear(x_packed, w_big, b_big, *, batch_tile):
    """x_packed: [Np, 128] -> [Np, 128] where each packed row is 32 logical rows."""
    n_packed = x_packed.shape[0]

    if n_packed <= batch_tile:
        # Single invocation, whole (small) arrays as single VMEM blocks.
        return pl.pallas_call(
            _packed_linear_kernel,
            out_shape=jax.ShapeDtypeStruct((n_packed, 128), x_packed.dtype),
        )(x_packed, w_big, b_big)

    # Tiled, pipelined path.  Ragged last block is masked by Pallas; no
    # XLA-side pad/slice of the full input/output.
    grid = (pl.cdiv(n_packed, batch_tile),)
    return pl.pallas_call(
        _packed_linear_kernel,
        out_shape=jax.ShapeDtypeStruct((n_packed, 128), x_packed.dtype),
        grid=grid,
        in_specs=[
            pl.BlockSpec((batch_tile, 128), lambda i: (i, 0)),
            pl.BlockSpec((128, 128), lambda i: (0, 0)),   # weight resident
            pl.BlockSpec((1, 128), lambda i: (0, 0)),     # bias resident
        ],
        out_specs=pl.BlockSpec((batch_tile, 128), lambda i: (i, 0)),
        compiler_params=pltpu.CompilerParams(
            dimension_semantics=("parallel",),            # shards tiles on v7x's 2 TCs
            vmem_limit_bytes=32 * 1024 * 1024,            # safe on v5e/v6e/v7x
        ),
    )(x_packed, w_big, b_big)


def _small_linear(x, w_t, b2):
    """Tail rows (< 32): tiny single-block VPU kernel."""
    r = x.shape[0]
    return pl.pallas_call(
        _small_linear_kernel,
        out_shape=jax.ShapeDtypeStruct((r, OUT_FEATURES), x.dtype),
    )(x, w_t, b2)


def linear(x, w_big, b_big, w_t, b2, *, batch_tile=DEFAULT_TILE):
    """x: [B, 4] -> [B, 4] computing x @ W^T + b with lane-dense packing."""
    B = x.shape[0]
    b_packed = (B // PACK) * PACK

    outs = []
    if b_packed > 0:
        x_main = x if b_packed == B else x[:b_packed]
        # Free row-major reshape: [b_packed, 4] -> [b_packed/32, 128].
        x_packed = x_main.reshape(b_packed // PACK, PACK * IN_FEATURES)
        y_packed = _packed_linear(x_packed, w_big, b_big, batch_tile=batch_tile)
        outs.append(y_packed.reshape(b_packed, OUT_FEATURES))   # free reshape back
    if b_packed < B:
        # At most 31 leftover rows; handled without padding the whole batch.
        outs.append(_small_linear(x[b_packed:], w_t, b2))

    if len(outs) == 1:
        return outs[0]
    return jnp.concatenate(outs, axis=0)


class MyModel00:
    """JAX/Pallas port of the PyTorch MyModel00 (Linear(4, 4))."""

    def __init__(self, key):
        k_w, k_b = jax.random.split(key)
        bound = 1.0 / jnp.sqrt(jnp.float32(IN_FEATURES))
        w = jax.random.uniform(
            k_w, (OUT_FEATURES, IN_FEATURES), jnp.float32, -bound, bound
        )
        b = jax.random.uniform(k_b, (OUT_FEATURES,), jnp.float32, -bound, bound)
        self.w = w                                   # [OUT, IN] (PyTorch layout)
        self.b = b                                   # [OUT]

        # Kernel-ready layouts, built ONCE:
        self.w_t = jnp.asarray(w.T)                                  # (4, 4)
        self.b2 = b.reshape(1, OUT_FEATURES)                         # (1, 4)
        # 128x128 block-diagonal weight: 32 copies of W^T on the diagonal.
        self.w_big = jnp.kron(jnp.eye(PACK, dtype=w.dtype), w.T)     # (128, 128)
        self.b_big = jnp.tile(b, PACK).reshape(1, PACK * OUT_FEATURES)  # (1, 128)

    def __call__(self, x, *, batch_tile=DEFAULT_TILE):
        return linear(x, self.w_big, self.b_big, self.w_t, self.b2,
                      batch_tile=batch_tile)


if __name__ == "__main__":
    key = jax.random.PRNGKey(0)
    k_model, k_x1, k_x2 = jax.random.split(key, 3)

    model = MyModel00(k_model)

    # Test 1: small batch exercising both the lane-dense packed path
    # (64 rows -> 2 packed 128-lane rows) and the <32-row VPU remainder path.
    x1 = jax.random.normal(k_x1, (70, IN_FEATURES), jnp.float32)
    out1 = jax.block_until_ready(model(x1))
    ref1 = x1 @ model.w.T + model.b
    assert out1.shape == (70, OUT_FEATURES)
    assert jnp.allclose(out1, ref1, atol=1e-5, rtol=1e-5)

    # Test 2: exercise the tiled/grid path, including the ragged (masked)
    # last block, with a deliberately tiny batch_tile so the test stays small.
    x2 = jax.random.normal(k_x2, (PACK * 40, IN_FEATURES), jnp.float32)  # 1280 rows
    out2 = jax.block_until_ready(model(x2, batch_tile=16))  # grid = cdiv(40,16) = 3
    ref2 = x2 @ model.w.T + model.b
    assert out2.shape == (PACK * 40, OUT_FEATURES)
    assert jnp.allclose(out2, ref2, atol=1e-5, rtol=1e-5)

    print("KERNEL_OK")
</pallas_src>

<mosaic_0001>
module attributes {stable_mosaic.version = 11 : i64} {
  func.func @_packed_linear_kernel(%arg0: memref<2x128xf32, #tpu.memory_space<vmem>>, %arg1: memref<128x128xf32, #tpu.memory_space<vmem>>, %arg2: memref<1x128xf32, #tpu.memory_space<vmem>>, %arg3: memref<2x128xf32, #tpu.memory_space<vmem>>) attributes {dimension_semantics = [], scalar_prefetch = 0 : i64, scratch_operands = 0 : i64, tpu.core_type = #tpu.core_type<tc>} {
    %c0 = arith.constant 0 : index
    %c0_0 = arith.constant 0 : index
    %0 = vector.load %arg0[%c0, %c0_0] : memref<2x128xf32, #tpu.memory_space<vmem>>, vector<2x128xf32>
    %c0_1 = arith.constant 0 : index
    %c0_2 = arith.constant 0 : index
    %1 = vector.load %arg1[%c0_1, %c0_2] : memref<128x128xf32, #tpu.memory_space<vmem>>, vector<128x128xf32>
    %cst = arith.constant dense<0.000000e+00> : vector<2x128xf32>
    %2 = tpu.matmul %0, %1, %cst {dimension_numbers = #tpu.dot_dimension_numbers<[1], [0], [0], [1], [0, 0, 1, 1], [], []>} : vector<2x128xf32>, vector<128x128xf32>, vector<2x128xf32> -> vector<2x128xf32>
    %c0_3 = arith.constant 0 : index
    %c0_4 = arith.constant 0 : index
    %3 = vector.load %arg2[%c0_3, %c0_4] : memref<1x128xf32, #tpu.memory_space<vmem>>, vector<1x128xf32>
    %4 = vector.broadcast %3 : vector<1x128xf32> to vector<2x128xf32>
    %5 = arith.addf %2, %4 : vector<2x128xf32>
    %c0_5 = arith.constant 0 : index
    %c0_6 = arith.constant 0 : index
    %6 = vector.load %arg3[%c0_5, %c0_6] : memref<2x128xf32, #tpu.memory_space<vmem>>, vector<2x128xf32>
    tpu.vector_store %arg3[%c0_5, %c0_6], %5 {strides = array<i32>} : memref<2x128xf32, #tpu.memory_space<vmem>>, vector<2x128xf32>,
    return
  }
}

</mosaic_0001>

<llo_original>
// kernel: tpu_custom_call.1
$region0: #{tpu_custom_call.1}
  #allocation0 [shape = 'u32[]', space=smem, size = 0x4, offset = 0x4, fixed_abs, tag = 'smem constant byte address 0x4 - core index']
  #allocation1 [shape = 'u32[144,128]{1,0:T(1,128)}', space=vmem, size = 0x12000, scoped, tag = 'internal scratch']
  %s0 = inlined_call_operand.hbm [shape: f32[2,128], index: 0, kind: input, shape index: {}]
  %s1 = inlined_call_operand.hbm [shape: f32[128,128], index: 1, kind: input, shape index: {}]
  %s2 = inlined_call_operand.vmem [shape: f32[1,128], index: 2, kind: input, shape index: {}]
  %s3 = inlined_call_operand.hbm [shape: f32[2,128], index: 3, kind: output, shape index: {}]
  %s4 = sld [smem:[#allocation0]]
  $region30: #{tpu_custom_call.1} parent=0
    _
  %s6 = ssub.s32 1, %s4
  %s7 = scalar_select 0, %s6, %s4
  $region1: #{tpu_custom_call.1} parent=0
    #allocation2 [shape = 'u8[1024]{0}', space=vmem, size = 0x400, scoped, tag = 'input window, operand 0, single buffered']
    #allocation3 [shape = 's32[1]{0}', space=sflag, size = 0x4, scoped, tag = 'scoped memory for tpu_custom_call.1']
    #allocation4 [shape = 's32[1]{0}', space=sflag, size = 0x4, scoped, tag = 'scoped memory for tpu_custom_call.1']
    #allocation5 [shape = 'u8[65536]{0}', space=vmem, size = 0x10000, scoped, tag = 'input window, operand 1, single buffered']
    #allocation6 [shape = 's32[1]{0}', space=sflag, size = 0x4, scoped, tag = 'scoped memory for tpu_custom_call.1']
    #allocation7 [shape = 'u8[1024]{0}', space=vmem, size = 0x400, scoped, tag = 'output window, operand 0, single buffered']
    %8 = vsyncpa [#allocation3], 0
    %9 = vsyncpa [#allocation6], 0
    %10 = vsyncpa [#allocation4], 0
    // Predicated region
    $region2: #{tpu_custom_call.1} parent=1 // pred_check
      _
    $region3: #{tpu_custom_call.1} parent=1 // pred_check_branch
      %12 = sbr.rel (0) target = $region5
    $region4: #{tpu_custom_call.1} parent=1 // pred_region
      %s14 = ssub.s32 32, 32
      %15 = vsyncadd [#allocation3], %s14
      %s17 = sshll.u32 [#allocation2], 4
      %s18 = int_to_ptr.vmem [resolvable:$true] %s17
      %20 = dma.hbm_to_vmem [thread:$0]  %s0, 32, %s18, [#allocation3]
    $region5: #{tpu_custom_call.1} parent=1 // pred_fallthru
      _
    // Predicated region
    $region6: #{tpu_custom_call.1} parent=1 // pred_check
      _
    $region7: #{tpu_custom_call.1} parent=1 // pred_check_branch
      %22 = sbr.rel (0) target = $region9
    $region8: #{tpu_custom_call.1} parent=1 // pred_region
      %s24 = ssub.s32 2048, 2048
      %25 = vsyncadd [#allocation6], %s24
      %s26 = sshll.u32 [#allocation5], 4
      %s27 = int_to_ptr.vmem [resolvable:$true] %s26
      %32 = dma.hbm_to_vmem [thread:$0]  %s1, 2048, %s27, [#allocation6], 128, 128, 8
    $region9: #{tpu_custom_call.1} parent=1 // pred_fallthru
      _
    // Predicated region
    $region10: #{tpu_custom_call.1} parent=1 // pred_check
      _
    $region11: #{tpu_custom_call.1} parent=1 // pred_check_branch
      %34 = sbr.rel (0) target = $region13
    $region12: #{tpu_custom_call.1} parent=1 // pred_region
      _
    $region13: #{tpu_custom_call.1} parent=1 // pred_fallthru
      _
    // Predicated region
    $region14: #{tpu_custom_call.1} parent=1 // pred_check
      _
    $region15: #{tpu_custom_call.1} parent=1 // pred_check_branch
      %36 = sbr.rel (0) target = $region17
    $region16: #{tpu_custom_call.1} parent=1 // pred_region
      %37 = dma.done [#allocation3], 32
    $region17: #{tpu_custom_call.1} parent=1 // pred_fallthru
      _
    // Predicated region
    $region18: #{tpu_custom_call.1} parent=1 // pred_check
      _
    $region19: #{tpu_custom_call.1} parent=1 // pred_check_branch
      %39 = sbr.rel (0) target = $region21
    $region20: #{tpu_custom_call.1} parent=1 // pred_region
      %40 = dma.done [#allocation6], 2048
    $region21: #{tpu_custom_call.1} parent=1 // pred_fallthru
      _
    %v41 = vld [vmem:[#allocation2] sm:$0x3]
    %v42 = vld [vmem:[#allocation5] sm:$0xff]
    %v43 = vld [vmem:[#allocation5 + $0x8] sm:$0xff]
    %v44 = vld [vmem:[#allocation5 + $0x10] sm:$0xff]
    %v45 = vld [vmem:[#allocation5 + $0x18] sm:$0xff]
    %v46 = vld [vmem:[#allocation5 + $0x20] sm:$0xff]
    %v47 = vld [vmem:[#allocation5 + $0x28] sm:$0xff]
    %v48 = vld [vmem:[#allocation5 + $0x30] sm:$0xff]
    %v49 = vld [vmem:[#allocation5 + $0x38] sm:$0xff]
    %v50 = vld [vmem:[#allocation5 + $0x40] sm:$0xff]
    %v51 = vld [vmem:[#allocation5 + $0x48] sm:$0xff]
    %v52 = vld [vmem:[#allocation5 + $0x50] sm:$0xff]
    %v53 = vld [vmem:[#allocation5 + $0x58] sm:$0xff]
    %v54 = vld [vmem:[#allocation5 + $0x60] sm:$0xff]
    %v55 = vld [vmem:[#allocation5 + $0x68] sm:$0xff]
    %v56 = vld [vmem:[#allocation5 + $0x70] sm:$0xff]
    %v57 = vld [vmem:[#allocation5 + $0x78] sm:$0xff]
    %v58 = vld [vmem:[%s2] sm:$0x1]
    %v60 = vlaneseq
    %v61 = vshrl.u32 %v60, 7
    %v62 = vsub.s32 0, %v61
    %v63 = vrot.slane %v58, %v62
    %65 = vmatprep.subr.mxu0 0.0
    %66 = vmatpush1.msra.mxu0 %v57
    %67 = vmatprep.subr.mxu0 0.0
    %68 = vmatpush1.msra.mxu0 %v56
    %69 = vmatprep.subr.mxu0 0.0
    %70 = vmatpush1.msra.mxu0 %v55
    %71 = vmatprep.subr.mxu0 0.0
    %72 = vmatpush1.msra.mxu0 %v54
    %73 = vmatprep.subr.mxu0 0.0
    %74 = vmatpush1.msra.mxu0 %v53
    %75 = vmatprep.subr.mxu0 0.0
    %76 = vmatpush1.msra.mxu0 %v52
    %77 = vmatprep.subr.mxu0 0.0
    %78 = vmatpush1.msra.mxu0 %v51
    %79 = vmatprep.subr.mxu0 0.0
    %80 = vmatpush1.msra.mxu0 %v50
    %81 = vmatprep.subr.mxu0 0.0
    %82 = vmatpush1.msra.mxu0 %v49
    %83 = vmatprep.subr.mxu0 0.0
    %84 = vmatpush1.msra.mxu0 %v48
    %85 = vmatprep.subr.mxu0 0.0
    %86 = vmatpush1.msra.mxu0 %v47
    %87 = vmatprep.subr.mxu0 0.0
    %88 = vmatpush1.msra.mxu0 %v46
    %89 = vmatprep.subr.mxu0 0.0
    %90 = vmatpush1.msra.mxu0 %v45
    %91 = vmatprep.subr.mxu0 0.0
    %92 = vmatpush1.msra.mxu0 %v44
    %93 = vmatprep.subr.mxu0 0.0
    %94 = vmatpush1.msra.mxu0 %v43
    %95 = vmatprep.subr.mxu0 0.0
    %96 = vmatpush1.msra.mxu0 %v42
    %97 = vmatprep.subr.mxu0 0.0
    %98 = vmatpush2.msra.mxu0 0.0
    %99 = vmatprep.subr.mxu0 0.0
    %100 = vmatpush2.msra.mxu0 0.0
    %101 = vmatprep.subr.mxu0 0.0
    %102 = vmatpush2.msra.mxu0 0.0
    %103 = vmatprep.subr.mxu0 0.0
    %104 = vmatpush2.msra.mxu0 0.0
    %105 = vmatprep.subr.mxu0 0.0
    %106 = vmatpush2.msra.mxu0 0.0
    %107 = vmatprep.subr.mxu0 0.0
    %108 = vmatpush2.msra.mxu0 0.0
    %109 = vmatprep.subr.mxu0 0.0
    %110 = vmatpush2.msra.mxu0 0.0
    %111 = vmatprep.subr.mxu0 0.0
    %112 = vmatpush2.msra.mxu0 0.0
    %113 = vmatprep.subr.mxu0 0.0
    %114 = vmatpush2.msra.mxu0 0.0
    %115 = vmatprep.subr.mxu0 0.0
    %116 = vmatpush2.msra.mxu0 0.0
    %117 = vmatprep.subr.mxu0 0.0
    %118 = vmatpush2.msra.mxu0 0.0
    %119 = vmatprep.subr.mxu0 0.0
    %120 = vmatpush2.msra.mxu0 0.0
    %121 = vmatprep.subr.mxu0 0.0
    %122 = vmatpush2.msra.mxu0 0.0
    %123 = vmatprep.subr.mxu0 0.0
    %124 = vmatpush2.msra.mxu0 0.0
    %125 = vmatprep.subr.mxu0 0.0
    %126 = vmatpush2.msra.mxu0 0.0
    %127 = vmatprep.subr.mxu0 0.0
    %128 = vmatpush2.msra.mxu0 0.0
    %129 = vmatprep.mubr.f32.mxu0 0.0
    %130 = vmatmul.mubr.f32.gmra.mxu0 %v41
    %v131 = vpop.f32.mrf.mxu0
    %v132 = vadd.f32 %v63, %v131
    %v133 = vpop.f32.mrf.mxu0
    %134 = vdwg.mxu0
    %135 = vst [vmem:[#allocation7] sm:$0x3] %v132
    // Predicated region
    $region22: #{tpu_custom_call.1} parent=1 // pred_check
      _
    $region23: #{tpu_custom_call.1} parent=1 // pred_check_branch
      %137 = sbr.rel (0) target = $region25
    $region24: #{tpu_custom_call.1} parent=1 // pred_region
      %s139 = ssub.s32 32, 32
      %140 = vsyncadd [#allocation4], %s139
      %s142 = sshll.u32 [#allocation7], 4
      %s143 = int_to_ptr.vmem [resolvable:$true] %s142
      %145 = dma.vmem_to_hbm [thread:$0]  %s143, 32, %s3, [#allocation4]
    $region25: #{tpu_custom_call.1} parent=1 // pred_fallthru
      _
    // Predicated region
    $region26: #{tpu_custom_call.1} parent=1 // pred_check
      _
    $region27: #{tpu_custom_call.1} parent=1 // pred_check_branch
      %147 = sbr.rel (0) target = $region29
    $region28: #{tpu_custom_call.1} parent=1 // pred_region
      %148 = dma.done [#allocation4], 32
    $region29: #{tpu_custom_call.1} parent=1 // pred_fallthru
      _
    %149 = vsyncpa [#allocation3], 1
    %150 = vsyncpa [#allocation6], 1
    %151 = vsyncpa [#allocation4], 1

</llo_original>
